<compile_context>
chip_gen: v6e
topology: v6e:2x2x1
jax: 0.10.0
libtpu: 0.0.40
codegen_flags: <defaults>
</compile_context>

<pallas_src>
import jax
import jax.numpy as jnp
from jax.experimental import pallas as pl
from jax.experimental.pallas import tpu as pltpu


def _cdiv(a, b):
    return -(-a // b)


def _round_up(a, m):
    return _cdiv(a, m) * m


def _round_down(a, m):
    return (a // m) * m


def out_conv_kernel(x_ref, w_ref, b_ref, o_ref):
    # x_ref: (Bb, C_in, Lt)  w_ref: (C_out, C_in)  b_ref: (C_out, 1)  o_ref: (Bb, C_out, Lt)
    bb = x_ref.shape[0]
    w = w_ref[...]                                   # resident weight (x dtype)
    bias = b_ref[...]                                # (C_out, 1), f32
    if bb == 1:
        acc = jnp.dot(w, x_ref[0], preferred_element_type=jnp.float32)   # (C_out, Lt)
        o_ref[0] = (acc + bias).astype(o_ref.dtype)
    else:
        x = x_ref[...]                               # (Bb, C_in, Lt)
        wb = jnp.broadcast_to(w, (bb,) + w.shape)    # hoisted, once per grid step
        acc = jnp.einsum('boc,bcl->bol', wb, x,
                         preferred_element_type=jnp.float32)             # (Bb, C_out, Lt)
        o_ref[...] = (acc + bias).astype(o_ref.dtype)


def out_conv(x, weight, bias, *, block_bytes=6 * 1024 * 1024):
    """x: (B, C_in, L).  weight: (C_out, C_in, 1).  bias: (C_out,)."""
    B, C_in, L = x.shape
    C_out = weight.shape[0]
    itemsize = jnp.dtype(x.dtype).itemsize

    # Glue: squeeze kernel_size=1; weight in activation dtype (bf16 MXU path when
    # x is bf16); bias 2-D f32 so the in-kernel add broadcasts along lanes for free.
    w2 = weight.reshape(C_out, C_in).astype(x.dtype)
    b2 = bias.astype(jnp.float32).reshape(C_out, 1)

    slab_bytes = C_in * L * itemsize                 # one batch's x slab

    if slab_bytes <= block_bytes:
        # Small-L regime: full L per block, pack a near-equal number of batches
        # per grid step so each DMA is multi-MiB (amortizes per-step overhead).
        lt = L
        bb_max = max(1, block_bytes // max(1, slab_bytes))
        n_b = _cdiv(B, min(B, bb_max))
        bb = _cdiv(B, n_b)
    else:
        # Large-L regime: one batch per step, near-equal 128-multiple L tiles
        # (no mostly-OOB sliver tile), each x block <= ~block_bytes.
        bb = 1
        max_lt = max(128, _round_down(block_bytes // (C_in * itemsize), 128))
        if L <= max_lt:
            lt = L
        else:
            n_l = _cdiv(L, max_lt)
            lt = min(max_lt, _round_up(_cdiv(L, n_l), 128))

    # v7x has 2 TensorCores and both grid axes are "parallel": a (1, 1) grid would
    # idle one core. Prefer splitting the batch; otherwise split L if it is splittable.
    if _cdiv(B, bb) * _cdiv(L, lt) < 2:
        if B >= 2:
            bb = _cdiv(B, 2)
        elif lt == L and L >= 256:
            lt = _round_up(_cdiv(L, 2), 128)

    grid = (_cdiv(B, bb), _cdiv(L, lt))

    # Scoped-VMEM budget: double-buffered in/out blocks + resident weight/bias.
    x_block = bb * C_in * lt * itemsize
    o_block = bb * C_out * lt * itemsize
    w_bytes = C_out * C_in * jnp.dtype(w2.dtype).itemsize
    footprint = 2 * (x_block + o_block) + w_bytes + C_out * 4
    vmem_limit = int(min(48 * 1024 * 1024, max(32 * 1024 * 1024, 2 * footprint)))

    cost = pl.CostEstimate(
        flops=2 * B * C_out * C_in * L,
        transcendentals=0,
        bytes_accessed=(B * C_in * L + B * C_out * L) * itemsize + w_bytes + C_out * 4,
    )

    return pl.pallas_call(
        out_conv_kernel,
        out_shape=jax.ShapeDtypeStruct((B, C_out, L), x.dtype),
        grid_spec=pltpu.PrefetchScalarGridSpec(
            num_scalar_prefetch=0,
            grid=grid,
            in_specs=[
                pl.BlockSpec((bb, C_in, lt), lambda b, l: (b, 0, l)),
                pl.BlockSpec((C_out, C_in), lambda b, l: (0, 0)),
                pl.BlockSpec((C_out, 1), lambda b, l: (0, 0)),
            ],
            out_specs=pl.BlockSpec((bb, C_out, lt), lambda b, l: (b, 0, l)),
        ),
        compiler_params=pltpu.CompilerParams(
            dimension_semantics=("parallel", "parallel"),
            vmem_limit_bytes=vmem_limit),
        cost_estimate=cost,
    )(x, w2, b2)


def out_conv_ref(x, weight, bias):
    """Pure-JAX reference mirroring the PyTorch Conv1d(kernel_size=1) forward."""
    w2 = weight.reshape(weight.shape[0], weight.shape[1])        # (C_out, C_in)
    return jnp.einsum('oc,bcl->bol', w2, x) + bias[None, :, None]


if __name__ == "__main__":
    key = jax.random.PRNGKey(0)

    def run_case(B, C_in, C_out, L, k):
        kx, kw, kb = jax.random.split(k, 3)
        x = jax.random.normal(kx, (B, C_in, L), dtype=jnp.float32)
        # Deterministic Conv1d-style init: uniform in +-1/sqrt(C_in * kernel_size).
        bound = 1.0 / jnp.sqrt(C_in * 1.0)
        weight = jax.random.uniform(kw, (C_out, C_in, 1),
                                    minval=-bound, maxval=bound, dtype=jnp.float32)
        bias = jax.random.uniform(kb, (C_out,),
                                  minval=-bound, maxval=bound, dtype=jnp.float32)

        out = jax.block_until_ready(out_conv(x, weight, bias))
        ref = out_conv_ref(x, weight, bias)
        assert out.shape == (B, C_out, L)
        assert jnp.allclose(out, ref, atol=1e-4, rtol=1e-5), "mismatch vs reference"

    k1, k2 = jax.random.split(key)
    # Case 1: small batch -> >=2-grid-step split kicks in (bb == 1, jnp.dot path).
    run_case(2, 64, 4, 128, k1)
    # Case 2: larger batch, odd C_out, non-128-multiple L -> multi-batch block
    # (bb > 1, batched-einsum path).
    run_case(8, 48, 3, 192, k2)

    print("KERNEL_OK")
</pallas_src>

<mosaic_0001>
module attributes {stable_mosaic.version = 11 : i64} {
  func.func @out_conv_kernel(%arg0: i32, %arg1: i32, %arg2: memref<1x64x128xf32, #tpu.memory_space<vmem>>, %arg3: memref<4x64xf32, #tpu.memory_space<vmem>>, %arg4: memref<4x1xf32, #tpu.memory_space<vmem>>, %arg5: memref<1x4x128xf32, #tpu.memory_space<vmem>>) attributes {dimension_semantics = [#tpu.dimension_semantics<parallel>, #tpu.dimension_semantics<parallel>], iteration_bounds = array<i64: 2, 1>, scalar_prefetch = 0 : i64, scratch_operands = 0 : i64, tpu.core_type = #tpu.core_type<tc>, window_params = [{transform_indices = @transform_0, window_bounds = array<i64: 1, 64, 128>}, {pipeline_mode = #tpu.pipeline_mode<synchronous>, transform_indices = @transform_1, window_bounds = array<i64: 4, 64>}, {pipeline_mode = #tpu.pipeline_mode<synchronous>, transform_indices = @transform_2, window_bounds = array<i64: 4, 1>}, {transform_indices = @transform_3, window_bounds = array<i64: 1, 4, 128>}]} {
    %c0 = arith.constant 0 : index
    %c0_0 = arith.constant 0 : index
    %0 = vector.load %arg3[%c0, %c0_0] : memref<4x64xf32, #tpu.memory_space<vmem>>, vector<4x64xf32>
    %c0_1 = arith.constant 0 : index
    %c0_2 = arith.constant 0 : index
    %1 = vector.load %arg4[%c0_1, %c0_2] : memref<4x1xf32, #tpu.memory_space<vmem>>, vector<4x1xf32>
    %c0_3 = arith.constant 0 : index
    %c0_4 = arith.constant 0 : index
    %c0_5 = arith.constant 0 : index
    %2 = vector.load %arg2[%c0_3, %c0_4, %c0_5] : memref<1x64x128xf32, #tpu.memory_space<vmem>>, vector<1x64x128xf32>
    %3 = vector.shape_cast %2 : vector<1x64x128xf32> to vector<64x128xf32>
    %cst = arith.constant dense<0.000000e+00> : vector<4x128xf32>
    %4 = tpu.matmul %0, %3, %cst {dimension_numbers = #tpu.dot_dimension_numbers<[1], [0], [0], [1], [0, 0, 1, 1], [], []>} : vector<4x64xf32>, vector<64x128xf32>, vector<4x128xf32> -> vector<4x128xf32>
    %5 = vector.broadcast %1 : vector<4x1xf32> to vector<4x128xf32>
    %6 = arith.addf %4, %5 : vector<4x128xf32>
    %c0_6 = arith.constant 0 : index
    %c0_7 = arith.constant 0 : index
    %c0_8 = arith.constant 0 : index
    %7 = vector.load %arg5[%c0_6, %c0_7, %c0_8] : memref<1x4x128xf32, #tpu.memory_space<vmem>>, vector<1x4x128xf32>
    %8 = vector.shape_cast %7 : vector<1x4x128xf32> to vector<4x128xf32>
    %9 = vector.shape_cast %6 : vector<4x128xf32> to vector<1x4x128xf32>
    tpu.vector_store %arg5[%c0_6, %c0_7, %c0_8], %9 {strides = array<i32>} : memref<1x4x128xf32, #tpu.memory_space<vmem>>, vector<1x4x128xf32>,
    return
  }
  func.func @transform_0(%arg0: i32, %arg1: i32) -> (i32, i32, i32) {
    %c0_i32 = arith.constant 0 : i32
    %c0_i32_0 = arith.constant 0 : i32
    return %arg0, %c0_i32, %arg1 : i32, i32, i32
  }
  func.func @transform_1(%arg0: i32, %arg1: i32) -> (i32, i32) {
    %c0_i32 = arith.constant 0 : i32
    %c0_i32_0 = arith.constant 0 : i32
    %c0_i32_1 = arith.constant 0 : i32
    return %c0_i32, %c0_i32_0 : i32, i32
  }
  func.func @transform_2(%arg0: i32, %arg1: i32) -> (i32, i32) {
    %c0_i32 = arith.constant 0 : i32
    %c0_i32_0 = arith.constant 0 : i32
    %c0_i32_1 = arith.constant 0 : i32
    return %c0_i32, %c0_i32_0 : i32, i32
  }
  func.func @transform_3(%arg0: i32, %arg1: i32) -> (i32, i32, i32) {
    %c0_i32 = arith.constant 0 : i32
    %c0_i32_0 = arith.constant 0 : i32
    return %arg0, %c0_i32, %arg1 : i32, i32, i32
  }
}

</mosaic_0001>

<llo_original>
// kernel: tpu_custom_call.1
$region0: #{tpu_custom_call.1}
  #allocation0 [shape = 'u32[]', space=smem, size = 0x4, offset = 0x4, fixed_abs, tag = 'smem constant byte address 0x4 - core index']
  #allocation1 [shape = 'u32[144,128]{1,0:T(1,128)}', space=vmem, size = 0x12000, scoped, tag = 'internal scratch']
  %s0 = inlined_call_operand.hbm [shape: f32[2,64,128], index: 0, kind: input, shape index: {}]
  %s1 = inlined_call_operand.vmem [shape: f32[4,64], index: 1, kind: input, shape index: {}]
  %s2 = inlined_call_operand.vmem [shape: f32[4,1], index: 2, kind: input, shape index: {}]
  %s3 = inlined_call_operand.hbm [shape: f32[2,4,128], index: 3, kind: output, shape index: {}]
  %s4 = sld [smem:[#allocation0]]
  $region49: #{tpu_custom_call.1} parent=0
    _
  %s6 = ssub.s32 1, %s4
  %s7 = scalar_select 0, %s6, %s4
  $region1: #{tpu_custom_call.1} parent=0
    #allocation2 [shape = 'u8[65536]{0}', space=vmem, size = 0x10000, scoped, tag = 'input window, operand 0']
    #allocation3 [shape = 's32[2]{0}', space=sflag, size = 0x8, scoped, tag = 'scoped memory for tpu_custom_call.1']
    #allocation4 [shape = 's32[2]{0}', space=sflag, size = 0x8, scoped, tag = 'scoped memory for tpu_custom_call.1']
    #allocation5 [shape = 'u8[4096]{0}', space=vmem, size = 0x1000, scoped, tag = 'output window, operand 0']
    %8 = vsyncpa [#allocation3], 0
    %s9 = scalar_lea.sflag [#allocation3], 1
    %10 = vsyncpa %s9, 0
    %11 = vsyncpa [#allocation4], 0
    %s12 = scalar_lea.sflag [#allocation4], 1
    %13 = vsyncpa %s12, 0
    loop: start=0, step=1, limit=4
    $region2: #{tpu_custom_call.1} parent=1 // loop_pre_header
      _
    $region3: #{tpu_custom_call.1} parent=1 // loop_header
      %s15 = sphi 0, %s19
      %p16 = scmp.ge.s32.totalorder %s15, 4
      %s22 = sphi 0, %s34
      %s23 = sphi 0, %s30
      %s24 = sphi 0, %s22
      %s25 = sphi 0, %s23
      %s26 = sphi 0, %s24
      %s27 = sphi 0, %s25
      %s39 = sphi 0, %s41
      %s42 = sphi 0, %s39
      %s43 = sphi 0, %s42
      %s59 = sphi 0, %s43
      %s63 = sphi 0, %s63
      %s65 = sphi 0, %s63
      %s66 = sphi 0, %s65
      %s80 = sphi 0, %s66
      %s84 = sphi 0, %s84
      %s86 = sphi 0, %s84
      %s87 = sphi 0, %s86
      %s101 = sphi 0, %s87
      %s109 = sphi 0, %s111
      %s112 = sphi 0, %s109
      %s113 = sphi 0, %s112
      %s129 = sphi 0, %s113
    $region4: #{tpu_custom_call.1} parent=1 // loop_header_branch
      %18 = sbr.rel (%p16) target = $region8
    $region5: #{tpu_custom_call.1} parent=1 // loop_body
      %s20 = ssub.s32 %s15, 1
      %s21 = ssub.s32 %s15, 2
      %s28 = sadd.s32 1, %s23
      %p29 = scmp.ge.s32.totalorder %s28, 1
      %s30 = scalar_select %p29, 0, %s28
      %s31 = sadd.s32 1, %s22
      %s32 = scalar_select %p29, %s31, %s22
      %p33 = scmp.ge.s32.totalorder %s32, 2
      %s34 = scalar_select %p33, 0, %s32
      %s35 = ssub.s32 %s22, %s34
      %s36 = ssub.s32 %s23, %s30
      %s37 = sor.u32 %s35, %s36
      %p38 = scmp.eq.s32.totalorder %s37, 0
      %s40 = sadd.s32 %s39, 1
      %s41 = scalar_select %p38, %s39, %s40
      %p44 = pneg %p38
      %p45 = scmp.eq.s32.totalorder %s15, 1
      %p46 = por %p44, %p45
      %p47 = scmp.ne.s32.totalorder %s39, %s42
      %p48 = scmp.eq.s32.totalorder %s15, 0
      %p49 = por %p47, %p48
      %p50 = scmp.ne.s32.totalorder %s39, %s42
      %p51 = scmp.eq.s32.totalorder %s20, 1
      %p52 = por %p50, %p51
      %p53 = scmp.ne.s32.totalorder %s42, %s43
      %p54 = scmp.eq.s32.totalorder %s20, 0
      %p55 = por %p53, %p54
      %p56 = scmp.ne.s32.totalorder %s42, %s43
      %p57 = scmp.eq.s32.totalorder %s21, 1
      %p58 = por %p56, %p57
      %p60 = scmp.ne.s32.totalorder %s43, %s59
      %p61 = scmp.eq.s32.totalorder %s21, 0
      %p62 = por %p60, %p61
      %s64 = sadd.s32 %s63, 1
      %p67 = scmp.eq.s32.totalorder %s15, 1
      %p68 = scmp.ne.s32.totalorder %s63, %s65
      %p69 = scmp.eq.s32.totalorder %s15, 0
      %p70 = por %p68, %p69
      %p71 = scmp.ne.s32.totalorder %s63, %s65
      %p72 = scmp.eq.s32.totalorder %s20, 1
      %p73 = por %p71, %p72
      %p74 = scmp.ne.s32.totalorder %s65, %s66
      %p75 = scmp.eq.s32.totalorder %s20, 0
      %p76 = por %p74, %p75
      %p77 = scmp.ne.s32.totalorder %s65, %s66
      %p78 = scmp.eq.s32.totalorder %s21, 1
      %p79 = por %p77, %p78
      %p81 = scmp.ne.s32.totalorder %s66, %s80
      %p82 = scmp.eq.s32.totalorder %s21, 0
      %p83 = por %p81, %p82
      %s85 = sadd.s32 %s84, 1
      %p88 = scmp.eq.s32.totalorder %s15, 1
      %p89 = scmp.ne.s32.totalorder %s84, %s86
      %p90 = scmp.eq.s32.totalorder %s15, 0
      %p91 = por %p89, %p90
      %p92 = scmp.ne.s32.totalorder %s84, %s86
      %p93 = scmp.eq.s32.totalorder %s20, 1
      %p94 = por %p92, %p93
      %p95 = scmp.ne.s32.totalorder %s86, %s87
      %p96 = scmp.eq.s32.totalorder %s20, 0
      %p97 = por %p95, %p96
      %p98 = scmp.ne.s32.totalorder %s86, %s87
      %p99 = scmp.eq.s32.totalorder %s21, 1
      %p100 = por %p98, %p99
      %p102 = scmp.ne.s32.totalorder %s87, %s101
      %p103 = scmp.eq.s32.totalorder %s21, 0
      %p104 = por %p102, %p103
      %s105 = ssub.s32 %s22, %s34
      %s106 = ssub.s32 %s23, %s30
      %s107 = sor.u32 %s105, %s106
      %p108 = scmp.eq.s32.totalorder %s107, 0
      %s110 = sadd.s32 %s109, 1
      %s111 = scalar_select %p108, %s109, %s110
      %p114 = pneg %p108
      %p115 = scmp.eq.s32.totalorder %s15, 1
      %p116 = por %p114, %p115
      %p117 = scmp.ne.s32.totalorder %s109, %s112
      %p118 = scmp.eq.s32.totalorder %s15, 0
      %p119 = por %p117, %p118
      %p120 = scmp.ne.s32.totalorder %s109, %s112
      %p121 = scmp.eq.s32.totalorder %s20, 1
      %p122 = por %p120, %p121
      %p123 = scmp.ne.s32.totalorder %s112, %s113
      %p124 = scmp.eq.s32.totalorder %s20, 0
      %p125 = por %p123, %p124
      %p126 = scmp.ne.s32.totalorder %s112, %s113
      %p127 = scmp.eq.s32.totalorder %s21, 1
      %p128 = por %p126, %p127
      %p130 = scmp.ne.s32.totalorder %s113, %s129
      %p131 = scmp.eq.s32.totalorder %s21, 0
      %p132 = por %p130, %p131
      %p133 = scmp.le.s32.totalorder 1, %s15
      %p134 = scmp.lt.s32.totalorder %s15, 3
      %p135 = pnand %p133, %p134
      %p136 = pneg %p135
      // Predicated region
      $region9: #{tpu_custom_call.1} parent=5 // pred_check
        _
      $region10: #{tpu_custom_call.1} parent=5 // pred_check_branch
        %138 = sbr.rel (%p135) target = $region12
      $region11: #{tpu_custom_call.1} parent=5 // pred_region
        %s139 = ssub.s32 %s15, 1
        // Predicated region
        $region13: #{tpu_custom_call.1} parent=11 // pred_check
          %p140 = pneg %p76
        $region14: #{tpu_custom_call.1} parent=11 // pred_check_branch
          %142 = sbr.rel (%p140) target = $region16
        $region15: #{tpu_custom_call.1} parent=11 // pred_region
          _
        $region16: #{tpu_custom_call.1} parent=11 // pred_fallthru
          _
        // Predicated region
        $region17: #{tpu_custom_call.1} parent=11 // pred_check
          %p143 = pneg %p97
        $region18: #{tpu_custom_call.1} parent=11 // pred_check_branch
          %145 = sbr.rel (%p143) target = $region20
        $region19: #{tpu_custom_call.1} parent=11 // pred_region
          _
        $region20: #{tpu_custom_call.1} parent=11 // pred_fallthru
          _
      $region12: #{tpu_custom_call.1} parent=5 // pred_fallthru
        _
      %p146 = scmp.lt.s32.totalorder %s15, 2
      // Predicated region
      $region21: #{tpu_custom_call.1} parent=5 // pred_check
        %p147 = pneg %p146
      $region22: #{tpu_custom_call.1} parent=5 // pred_check_branch
        %149 = sbr.rel (%p147) target = $region24
      $region23: #{tpu_custom_call.1} parent=5 // pred_region
        // Predicated region
        $region25: #{tpu_custom_call.1} parent=23 // pred_check
          %p150 = pneg %p49
        $region26: #{tpu_custom_call.1} parent=23 // pred_check_branch
          %152 = sbr.rel (%p150) target = $region28
        $region27: #{tpu_custom_call.1} parent=23 // pred_region
          %s153 = sand.u32 %s39, 1
          %s154 = scalar_lea.sflag [#allocation3], %s153
          %s155 = sand.u32 %s39, 1
          %s156 = smul.addr %s155, 64
          %s157 = scalar_lea.vmem [#allocation2], %s156
          %s159 = ssub.s32 1024, 1024
          %160 = vsyncadd %s154, %s159
          %s161 = smul.addr %s22, 8
          %s162 = sadd.s32 %s23, %s161
          %s163 = smul.addr %s162, 128
          %s164 = scalar_lea.hbm %s0, %s163
          %s165 = sshll.u32 %s157, 4
          %s166 = int_to_ptr.vmem [resolvable:$true] %s165
          %171 = dma.hbm_to_vmem [thread:$0]  %s164, 1024, %s166, %s154, 128, 128, 8
        $region28: #{tpu_custom_call.1} parent=23 // pred_fallthru
          _
      $region24: #{tpu_custom_call.1} parent=5 // pred_fallthru
        _
      %p172 = scmp.le.s32.totalorder 1, %s15
      %p173 = scmp.lt.s32.totalorder %s15, 3
      %p174 = pnand %p172, %p173
      %p175 = pneg %p174
      // Predicated region
      $region29: #{tpu_custom_call.1} parent=5 // pred_check
        _
      $region30: #{tpu_custom_call.1} parent=5 // pred_check_branch
        %177 = sbr.rel (%p174) target = $region32
      $region31: #{tpu_custom_call.1} parent=5 // pred_region
        %s178 = ssub.s32 %s15, 1
        %s179 = sand.u32 %s42, 1
        %s180 = scalar_lea.sflag [#allocation3], %s179
        %s181 = sand.u32 %s42, 1
        %s182 = smul.addr %s181, 64
        %s183 = scalar_lea.vmem [#allocation2], %s182
        // Predicated region
        $region33: #{tpu_custom_call.1} parent=31 // pred_check
          %p184 = pneg %p55
        $region34: #{tpu_custom_call.1} parent=31 // pred_check_branch
          %186 = sbr.rel (%p184) target = $region36
        $region35: #{tpu_custom_call.1} parent=31 // pred_region
          %187 = dma.done %s180, 1024
        $region36: #{tpu_custom_call.1} parent=31 // pred_fallthru
          _
        %s188 = sand.u32 %s42, 1
        %s189 = scalar_lea.sflag [#allocation3], %s188
        %s190 = sand.u32 %s42, 1
        %s191 = smul.addr %s190, 64
        %s192 = scalar_lea.vmem [#allocation2], %s191
        %p193 = pneg %p55
        %p194 = pneg %p52
        %p195 = pneg %p76
        %p196 = pneg %p73
        %p197 = pneg %p97
        %p198 = pneg %p94
        %p199 = pneg %p125
        %p200 = pneg %p122
        %s201 = sand.u32 %s112, 1
        %s202 = scalar_lea.sflag [#allocation4], %s201
        %s203 = sand.u32 %s112, 1
        %s204 = smul.addr %s203, 4
        %s205 = scalar_lea.vmem [#allocation5], %s204
        %v206 = vld [vmem:[%s1] sm:$0xf]
        %v207 = vld [vmem:[%s2] sm:$0xf]
        %v208 = vld [vmem:[%s183] sm:$0xff]
        %v209 = vld [vmem:[%s183 + $0x8] sm:$0xff]
        %v210 = vld [vmem:[%s183 + $0x10] sm:$0xff]
        %v211 = vld [vmem:[%s183 + $0x18] sm:$0xff]
        %v212 = vld [vmem:[%s183 + $0x20] sm:$0xff]
        %v213 = vld [vmem:[%s183 + $0x28] sm:$0xff]
        %v214 = vld [vmem:[%s183 + $0x30] sm:$0xff]
        %v215 = vld [vmem:[%s183 + $0x38] sm:$0xff]
        %217 = vset.pattern.permute.xlu0 0
        %218 = vperm.xlu0 %217, %v207
        %v219 = vpop.permute.xlu0 %218
        %vm221 = vcmask 523264
        %v223 = vsel %vm221, %v206, 0
        %225 = vmatprep.subr.mxu0 0.0
        %226 = vmatpush1.msra.mxu0 0.0
        %227 = vmatprep.subr.mxu0 0.0
        %228 = vmatpush1.msra.mxu0 0.0
        %229 = vmatprep.subr.mxu0 0.0
        %230 = vmatpush1.msra.mxu0 0.0
        %231 = vmatprep.subr.mxu0 0.0
        %232 = vmatpush1.msra.mxu0 0.0
        %233 = vmatprep.subr.mxu0 0.0
        %234 = vmatpush1.msra.mxu0 0.0
        %235 = vmatprep.subr.mxu0 0.0
        %236 = vmatpush1.msra.mxu0 0.0
        %237 = vmatprep.subr.mxu0 0.0
        %238 = vmatpush1.msra.mxu0 0.0
        %239 = vmatprep.subr.mxu0 0.0
        %240 = vmatpush1.msra.mxu0 0.0
        %241 = vmatprep.subr.mxu0 0.0
        %242 = vmatpush1.msra.mxu0 %v215
        %243 = vmatprep.subr.mxu0 0.0
        %244 = vmatpush1.msra.mxu0 %v214
        %245 = vmatprep.subr.mxu0 0.0
        %246 = vmatpush1.msra.mxu0 %v213
        %247 = vmatprep.subr.mxu0 0.0
        %248 = vmatpush1.msra.mxu0 %v212
        %249 = vmatprep.subr.mxu0 0.0
        %250 = vmatpush1.msra.mxu0 %v211
        %251 = vmatprep.subr.mxu0 0.0
        %252 = vmatpush1.msra.mxu0 %v210
        %253 = vmatprep.subr.mxu0 0.0
        %254 = vmatpush1.msra.mxu0 %v209
        %255 = vmatprep.subr.mxu0 0.0
        %256 = vmatpush1.msra.mxu0 %v208
        %257 = vmatprep.subr.mxu0 0.0
        %258 = vmatpush2.msra.mxu0 0.0
        %259 = vmatprep.subr.mxu0 0.0
        %260 = vmatpush2.msra.mxu0 0.0
        %261 = vmatprep.subr.mxu0 0.0
        %262 = vmatpush2.msra.mxu0 0.0
        %263 = vmatprep.subr.mxu0 0.0
        %264 = vmatpush2.msra.mxu0 0.0
        %265 = vmatprep.subr.mxu0 0.0
        %266 = vmatpush2.msra.mxu0 0.0
        %267 = vmatprep.subr.mxu0 0.0
        %268 = vmatpush2.msra.mxu0 0.0
        %269 = vmatprep.subr.mxu0 0.0
        %270 = vmatpush2.msra.mxu0 0.0
        %271 = vmatprep.subr.mxu0 0.0
        %272 = vmatpush2.msra.mxu0 0.0
        %273 = vmatprep.subr.mxu0 0.0
        %274 = vmatpush2.msra.mxu0 0.0
        %275 = vmatprep.subr.mxu0 0.0
        %276 = vmatpush2.msra.mxu0 0.0
        %277 = vmatprep.subr.mxu0 0.0
        %278 = vmatpush2.msra.mxu0 0.0
        %279 = vmatprep.subr.mxu0 0.0
        %280 = vmatpush2.msra.mxu0 0.0
        %281 = vmatprep.subr.mxu0 0.0
        %282 = vmatpush2.msra.mxu0 0.0
        %283 = vmatprep.subr.mxu0 0.0
        %284 = vmatpush2.msra.mxu0 0.0
        %285 = vmatprep.subr.mxu0 0.0
        %286 = vmatpush2.msra.mxu0 0.0
        %287 = vmatprep.subr.mxu0 0.0
        %288 = vmatpush2.msra.mxu0 0.0
        %289 = vmatprep.mubr.f32.mxu0 0.0
        %290 = vmatmul.mubr.f32.gmra.mxu0 %v223
        %v291 = vpop.f32.mrf.mxu0
        %v292 = vadd.f32 %v219, %v291
        %v293 = vpop.f32.mrf.mxu0
        %294 = vdwg.mxu0
        %295 = vst [vmem:[%s205] sm:$0xf] %v292
        %s296 = sand.u32 %s112, 1
        %s297 = scalar_lea.sflag [#allocation4], %s296
        %s298 = sand.u32 %s112, 1
        %s299 = smul.addr %s298, 4
        %s300 = scalar_lea.vmem [#allocation5], %s299
        // Predicated region
        $region37: #{tpu_custom_call.1} parent=31 // pred_check
          %p301 = pneg %p122
        $region38: #{tpu_custom_call.1} parent=31 // pred_check_branch
          %303 = sbr.rel (%p301) target = $region40
        $region39: #{tpu_custom_call.1} parent=31 // pred_region
          %s305 = ssub.s32 64, 64
          %306 = vsyncadd %s297, %s305
          %s307 = sadd.s32 %s25, %s24
          %s308 = smul.addr %s307, 64
          %s309 = scalar_lea.hbm %s3, %s308
          %s311 = sshll.u32 %s300, 4
          %s312 = int_to_ptr.vmem [resolvable:$true] %s311
          %314 = dma.vmem_to_hbm [thread:$0]  %s312, 64, %s309, %s297
        $region40: #{tpu_custom_call.1} parent=31 // pred_fallthru
          _
      $region32: #{tpu_custom_call.1} parent=5 // pred_fallthru
        _
      %p315 = scmp.le.s32.totalorder 2, %s15
      // Predicated region
      $region41: #{tpu_custom_call.1} parent=5 // pred_check
        %p316 = pneg %p315
      $region42: #{tpu_custom_call.1} parent=5 // pred_check_branch
        %318 = sbr.rel (%p316) target = $region44
      $region43: #{tpu_custom_call.1} parent=5 // pred_region
        %s319 = ssub.s32 %s15, 2
        // Predicated region
        $region45: #{tpu_custom_call.1} parent=43 // pred_check
          %p320 = pneg %p128
        $region46: #{tpu_custom_call.1} parent=43 // pred_check_branch
          %322 = sbr.rel (%p320) target = $region48
        $region47: #{tpu_custom_call.1} parent=43 // pred_region
          %s323 = sand.u32 %s113, 1
          %s324 = scalar_lea.sflag [#allocation4], %s323
          %s325 = sand.u32 %s113, 1
          %s326 = smul.addr %s325, 4
          %s327 = scalar_lea.vmem [#allocation5], %s326
          %328 = dma.done %s324, 64
        $region48: #{tpu_custom_call.1} parent=43 // pred_fallthru
          _
      $region44: #{tpu_custom_call.1} parent=5 // pred_fallthru
        _
    $region6: #{tpu_custom_call.1} parent=1 // loop_footer
      %s19 = sadd.s32 1, %s15
    $region7: #{tpu_custom_call.1} parent=1 // loop_footer_branch
      %14 = sbr.rel target = $region3
    $region8: #{tpu_custom_call.1} parent=1 // loop_exit
      _
    %329 = vsyncpa [#allocation3], 1
    %s330 = scalar_lea.sflag [#allocation3], 1
    %331 = vsyncpa %s330, 1
    %332 = vsyncpa [#allocation4], 1
    %s333 = scalar_lea.sflag [#allocation4], 1
    %334 = vsyncpa %s333, 1

</llo_original>
